<compile_context>
chip_gen: v5e
topology: v5e:2x2
jax: 0.10.0
libtpu: 0.0.40
codegen_flags: <defaults>
</compile_context>

<pallas_src>
import functools

import jax
import jax.numpy as jnp
from jax.experimental import pallas as pl
from jax.experimental.pallas import tpu as pltpu

GAMMA = 2.0          # compile-time constant; implemented as pt * pt
ALPHA = 0.25
LOSS_WEIGHT = 1.0
NUM_PARTITIONS = 2   # v7x has 2 TensorCores; extra "parallel" steps are harmless on v5e/v6e


def _round_up(x, m):
    return (x + m - 1) // m * m


def _plan_grid(num_rows, num_partitions, min_rows, max_rows=1024):
    """Pick (partitions, tiles_per_partition, tile_rows) covering `num_rows` rows.

    Invariant: partitions * tiles_per_partition == ceil(num_rows / tile_rows), so
    every grid step's block starts in-bounds (only the global last block may be
    ragged).  Falls back to a single partition when the input is too small.
    """
    p = max(1, num_partitions)
    tile = min(max_rows, max(min_rows, _round_up(pl.cdiv(num_rows, p * 4), min_rows)))
    total = _round_up(pl.cdiv(num_rows, tile), p)
    tile = _round_up(pl.cdiv(num_rows, total), min_rows)
    if pl.cdiv(num_rows, tile) != total:           # too small to split across cores
        p = 1
        tile = min(max_rows, max(min_rows, _round_up(pl.cdiv(num_rows, 4), min_rows)))
        total = pl.cdiv(num_rows, tile)
    return p, total // p, tile


def _focal_kernel(pred_ref, tgt_ref, out_ref, *, num_classes, group,
                  tiles_per_part, total_tiles, n_valid, mask_tail):
    """One (tile_rows, 128) flat tile of pred; accumulates an (8,128) partial sum.

    pred_ref: (tile_rows, 128) logits, flat index f = n*C + c  (lane class = f % C).
    tgt_ref : (tile_rows, group) int32 labels, group = 128 // C batch items per row.
    out_ref : (8, 128) f32 per-core partial-sum accumulator (resident across tiles).
    """
    p = pl.program_id(0)
    t = pl.program_id(1)
    shift = num_classes.bit_length() - 1          # C is a power of two (C | 128)

    @pl.when(t == 0)
    def _init():
        out_ref[...] = jnp.zeros_like(out_ref)

    x = pred_ref[...].astype(jnp.float32)         # per-tile upcast (bf16 inputs OK)
    shape = x.shape
    tile_rows = shape[0]

    # Expand per-group targets to per-lane targets with a tiny one-hot matmul
    # (MXU is otherwise idle): expand[j, l] = (l // C == j).
    lane_g = jax.lax.broadcasted_iota(jnp.int32, (group, 128), 1)
    grp_g = jax.lax.broadcasted_iota(jnp.int32, (group, 128), 0)
    expand = ((lane_g >> shift) == grp_g).astype(jnp.float32)          # (group, 128)
    tgt_lane = jnp.dot(tgt_ref[...].astype(jnp.float32), expand,
                       preferred_element_type=jnp.float32)             # (tile, 128)

    class_id = (jax.lax.broadcasted_iota(jnp.int32, shape, 1)
                & (num_classes - 1)).astype(jnp.float32)
    match = tgt_lane == class_id                  # background label (== C) never matches

    # Select-based focal loss (t in {0,1} folded into z / alpha_t):
    #   z   = t ? -x : x ;  pt = sigmoid(z) ;  bce = softplus(z)
    ax = jnp.abs(x)
    e = jnp.exp(-ax)
    one_p_e = 1.0 + e
    inv = pl.reciprocal(one_p_e, approx=True)     # EUP slot; ~1e-4 rel err
    z = jnp.where(match, -x, x)
    pt = jnp.where(z >= 0.0, inv, e * inv)        # sigmoid(z)
    bce = jnp.maximum(z, 0.0) + jnp.log(one_p_e)  # softplus(z); reuses (1 + e)
    alpha_t = jnp.where(match, ALPHA, 1.0 - ALPHA)
    loss = alpha_t * (pt * pt) * bce              # gamma == 2.0 -> pt * pt

    def _vreg_sum(v):                             # (tile_rows, 128) -> (8, 128), VALU adds only
        part = v[0:8, :]
        for k in range(1, tile_rows // 8):
            part = part + v[8 * k:8 * (k + 1), :]
        return part

    if mask_tail:
        ft = p * tiles_per_part + t               # logical flat tile index
        is_last = ft == (total_tiles - 1)

        @pl.when(is_last)
        def _tail():                              # mask padded / ragged flat elements
            row = jax.lax.broadcasted_iota(jnp.int32, shape, 0)
            lane = jax.lax.broadcasted_iota(jnp.int32, shape, 1)
            fidx = (ft * tile_rows + row) * 128 + lane
            out_ref[...] += _vreg_sum(jnp.where(fidx < n_valid, loss, 0.0))

        @pl.when(jnp.logical_not(is_last))
        def _body():
            out_ref[...] += _vreg_sum(loss)
    else:
        out_ref[...] += _vreg_sum(loss)


@jax.jit
def multilabel_focal_loss(pred, target):
    """pred: (N, C) float logits; target: (N,) int labels in [0, C]. Returns scalar."""
    n, c = pred.shape
    if 128 % c != 0:
        # TODO(synk): classes not dividing 128 would need the (C, N) transposed layout path.
        raise NotImplementedError("multilabel_focal_loss kernel assumes num_classes | 128")
    g = 128 // c

    tgt = target.astype(jnp.int32)
    n_pad = _round_up(n, g)
    if n_pad != n:
        # Only when N % (128//C) != 0: one extra pred copy; padded rows are masked in-kernel.
        pred = jnp.pad(pred, ((0, n_pad - n), (0, 0)))
        tgt = jnp.pad(tgt, (0, n_pad - n), constant_values=c)

    r = n_pad * c // 128
    pred_flat = pred.reshape(r, 128)              # free row-major reshape (no HBM pass)
    tgt_grp = tgt.reshape(r, g)                   # free reshape; target stays tiny

    min_rows = {1: 32, 2: 16}.get(pred.dtype.itemsize, 8)     # packed-dtype sublane granularity
    num_parts, t_per_part, tile_r = _plan_grid(r, NUM_PARTITIONS, min_rows)
    total_tiles = num_parts * t_per_part
    mask_tail = (total_tiles * tile_r != r) or (n_pad != n)

    kernel = functools.partial(
        _focal_kernel, num_classes=c, group=g, tiles_per_part=t_per_part,
        total_tiles=total_tiles, n_valid=n * c, mask_tail=mask_tail)

    partials = pl.pallas_call(
        kernel,
        out_shape=jax.ShapeDtypeStruct((num_parts * 8, 128), jnp.float32),
        grid=(num_parts, t_per_part),
        in_specs=[
            pl.BlockSpec((tile_r, 128), lambda p, t: (p * t_per_part + t, 0)),
            pl.BlockSpec((tile_r, g), lambda p, t: (p * t_per_part + t, 0)),
        ],
        out_specs=pl.BlockSpec((8, 128), lambda p, t: (p, 0)),
        compiler_params=pltpu.CompilerParams(
            dimension_semantics=("parallel", "arbitrary")),
    )(pred_flat, tgt_grp)

    return (LOSS_WEIGHT / (n * c)) * jnp.sum(partials)


def _reference(pred, target):
    """Pure-JAX reference mirroring the PyTorch forward (default args)."""
    n, c = pred.shape
    onehot = jax.nn.one_hot(target, c + 1, dtype=jnp.float32)[:, :c]
    x = pred.astype(jnp.float32)
    p = jax.nn.sigmoid(x)
    pt = (1.0 - p) * onehot + p * (1.0 - onehot)
    w = (ALPHA * onehot + (1.0 - ALPHA) * (1.0 - onehot)) * pt ** GAMMA
    bce = jnp.maximum(x, 0.0) - x * onehot + jnp.log1p(jnp.exp(-jnp.abs(x)))
    loss = bce * w
    return LOSS_WEIGHT * loss.mean(axis=0).mean()   # per-class mean over batch, then mean


if __name__ == "__main__":
    key = jax.random.PRNGKey(0)
    k1, k2, k3, k4 = jax.random.split(key, 4)
    C = 8

    # Case 1: aligned batch (N % (128//C) == 0) -> zero-copy flat layout, no mask, 2-way grid.
    N1 = 256
    pred1 = jax.random.normal(k1, (N1, C), dtype=jnp.float32)
    tgt1 = jax.random.randint(k2, (N1,), 0, C + 1, dtype=jnp.int32)   # label C == background
    out1 = multilabel_focal_loss(pred1, tgt1)
    jax.block_until_ready(out1)
    ref1 = _reference(pred1, tgt1)
    assert jnp.allclose(out1, ref1, rtol=1e-3, atol=1e-6), (out1, ref1)

    # Case 2: ragged batch (N % 16 != 0) -> wrapper pad + last-tile mask path.
    N2 = 200
    pred2 = jax.random.normal(k3, (N2, C), dtype=jnp.float32)
    tgt2 = jax.random.randint(k4, (N2,), 0, C + 1, dtype=jnp.int32)
    out2 = multilabel_focal_loss(pred2, tgt2)
    jax.block_until_ready(out2)
    ref2 = _reference(pred2, tgt2)
    assert jnp.allclose(out2, ref2, rtol=1e-3, atol=1e-6), (out2, ref2)

    # Case 3: bf16 logits (kernel upcasts per tile; halves the dominant HBM read on v5e).
    pred3 = pred1.astype(jnp.bfloat16)
    out3 = multilabel_focal_loss(pred3, tgt1)
    jax.block_until_ready(out3)
    ref3 = _reference(pred3.astype(jnp.float32), tgt1)
    assert jnp.allclose(out3, ref3, rtol=1e-3, atol=1e-6), (out3, ref3)

    print("KERNEL_OK")
</pallas_src>

<mosaic_0001>
module attributes {stable_mosaic.version = 11 : i64} {
  func.func @_focal_kernel(%arg0: i32, %arg1: i32, %arg2: memref<8x128xf32, #tpu.memory_space<vmem>>, %arg3: memref<8x16xi32, #tpu.memory_space<vmem>>, %arg4: memref<8x128xf32, #tpu.memory_space<vmem>>) attributes {dimension_semantics = [#tpu.dimension_semantics<parallel>, #tpu.dimension_semantics<arbitrary>], iteration_bounds = array<i64: 2, 1>, scalar_prefetch = 0 : i64, scratch_operands = 0 : i64, tpu.core_type = #tpu.core_type<tc>, window_params = [{transform_indices = @transform_0, window_bounds = array<i64: 8, 128>}, {transform_indices = @transform_1, window_bounds = array<i64: 8, 16>}, {transform_indices = @transform_2, window_bounds = array<i64: 8, 128>}]} {
    %c0_i32 = arith.constant 0 : i32
    %0 = arith.cmpi eq, %arg1, %c0_i32 : i32
    %1 = arith.extui %0 : i1 to i32
    %c0_i32_0 = arith.constant 0 : i32
    %2 = arith.cmpi ne, %1, %c0_i32_0 : i32
    scf.if %2 {
      %cst_15 = arith.constant 0.000000e+00 : f32
      %46 = vector.broadcast %cst_15 : f32 to vector<8x128xf32>
      %c0_16 = arith.constant 0 : index
      %c0_17 = arith.constant 0 : index
      %47 = vector.load %arg4[%c0_16, %c0_17] : memref<8x128xf32, #tpu.memory_space<vmem>>, vector<8x128xf32>
      tpu.vector_store %arg4[%c0_16, %c0_17], %46 {strides = array<i32>} : memref<8x128xf32, #tpu.memory_space<vmem>>, vector<8x128xf32>,
    } else {
    }
    %c0 = arith.constant 0 : index
    %c0_1 = arith.constant 0 : index
    %3 = vector.load %arg2[%c0, %c0_1] : memref<8x128xf32, #tpu.memory_space<vmem>>, vector<8x128xf32>
    %4 = tpu.iota {dimensions = array<i32: 1>} : vector<16x128xi32>
    %5 = tpu.iota {dimensions = array<i32: 0>} : vector<16x128xi32>
    %c3_i32 = arith.constant 3 : i32
    %6 = vector.broadcast %c3_i32 : i32 to vector<16x128xi32>
    %7 = arith.shrsi %4, %6 : vector<16x128xi32>
    %8 = arith.cmpi eq, %7, %5 : vector<16x128xi32>
    %9 = arith.extui %8 : vector<16x128xi1> to vector<16x128xi32>
    %10 = arith.sitofp %9 : vector<16x128xi32> to vector<16x128xf32>
    %c0_2 = arith.constant 0 : index
    %c0_3 = arith.constant 0 : index
    %11 = vector.load %arg3[%c0_2, %c0_3] : memref<8x16xi32, #tpu.memory_space<vmem>>, vector<8x16xi32>
    %12 = arith.sitofp %11 : vector<8x16xi32> to vector<8x16xf32>
    %cst = arith.constant dense<0.000000e+00> : vector<8x128xf32>
    %13 = tpu.matmul %12, %10, %cst {dimension_numbers = #tpu.dot_dimension_numbers<[1], [0], [0], [1], [0, 0, 1, 1], [], []>} : vector<8x16xf32>, vector<16x128xf32>, vector<8x128xf32> -> vector<8x128xf32>
    %14 = tpu.iota {dimensions = array<i32: 1>} : vector<8x128xi32>
    %c7_i32 = arith.constant 7 : i32
    %15 = vector.broadcast %c7_i32 : i32 to vector<8x128xi32>
    %16 = arith.andi %14, %15 : vector<8x128xi32>
    %17 = arith.sitofp %16 : vector<8x128xi32> to vector<8x128xf32>
    %18 = arith.cmpf oeq, %13, %17 : vector<8x128xf32>
    %19 = math.absf %3 : vector<8x128xf32>
    %cst_4 = arith.constant 0.000000e+00 : f32
    %20 = vector.broadcast %cst_4 : f32 to vector<8x128xf32>
    %21 = arith.subf %20, %19 : vector<8x128xf32>
    %22 = math.exp %21 : vector<8x128xf32>
    %cst_5 = arith.constant 1.000000e+00 : f32
    %23 = vector.broadcast %cst_5 : f32 to vector<8x128xf32>
    %24 = arith.addf %23, %22 : vector<8x128xf32>
    %25 = tpu.reciprocal %24 {approx = true} : vector<8x128xf32> -> vector<8x128xf32>
    %cst_6 = arith.constant 0.000000e+00 : f32
    %26 = vector.broadcast %cst_6 : f32 to vector<8x128xf32>
    %27 = arith.subf %26, %3 : vector<8x128xf32>
    %28 = arith.select %18, %27, %3 : vector<8x128xi1>, vector<8x128xf32>
    %cst_7 = arith.constant 0.000000e+00 : f32
    %29 = vector.broadcast %cst_7 : f32 to vector<8x128xf32>
    %30 = arith.cmpf oge, %28, %29 : vector<8x128xf32>
    %31 = arith.mulf %22, %25 : vector<8x128xf32>
    %32 = arith.select %30, %25, %31 : vector<8x128xi1>, vector<8x128xf32>
    %cst_8 = arith.constant 0.000000e+00 : f32
    %33 = vector.broadcast %cst_8 : f32 to vector<8x128xf32>
    %34 = arith.maximumf %28, %33 : vector<8x128xf32>
    %35 = math.log %24 : vector<8x128xf32>
    %36 = arith.addf %34, %35 : vector<8x128xf32>
    %cst_9 = arith.constant 2.500000e-01 : f32
    %cst_10 = arith.constant 7.500000e-01 : f32
    %37 = vector.broadcast %cst_9 : f32 to vector<8x128xf32>
    %38 = vector.broadcast %cst_10 : f32 to vector<8x128xf32>
    %39 = arith.select %18, %37, %38 : vector<8x128xi1>, vector<8x128xf32>
    %40 = arith.mulf %32, %32 : vector<8x128xf32>
    %41 = arith.mulf %39, %40 : vector<8x128xf32>
    %42 = arith.mulf %41, %36 : vector<8x128xf32>
    %c0_11 = arith.constant 0 : index
    %c0_12 = arith.constant 0 : index
    %43 = vector.load %arg4[%c0_11, %c0_12] : memref<8x128xf32, #tpu.memory_space<vmem>>, vector<8x128xf32>
    %44 = arith.addf %43, %42 : vector<8x128xf32>
    %c0_13 = arith.constant 0 : index
    %c0_14 = arith.constant 0 : index
    %45 = vector.load %arg4[%c0_13, %c0_14] : memref<8x128xf32, #tpu.memory_space<vmem>>, vector<8x128xf32>
    tpu.vector_store %arg4[%c0_13, %c0_14], %44 {strides = array<i32>} : memref<8x128xf32, #tpu.memory_space<vmem>>, vector<8x128xf32>,
    return
  }
  func.func @transform_0(%arg0: i32, %arg1: i32) -> (i32, i32) {
    %c1_i32 = arith.constant 1 : i32
    %0 = arith.muli %arg0, %c1_i32 : i32
    %1 = arith.addi %0, %arg1 : i32
    %c0_i32 = arith.constant 0 : i32
    %c0_i32_0 = arith.constant 0 : i32
    return %1, %c0_i32 : i32, i32
  }
  func.func @transform_1(%arg0: i32, %arg1: i32) -> (i32, i32) {
    %c1_i32 = arith.constant 1 : i32
    %0 = arith.muli %arg0, %c1_i32 : i32
    %1 = arith.addi %0, %arg1 : i32
    %c0_i32 = arith.constant 0 : i32
    %c0_i32_0 = arith.constant 0 : i32
    return %1, %c0_i32 : i32, i32
  }
  func.func @transform_2(%arg0: i32, %arg1: i32) -> (i32, i32) {
    %c0_i32 = arith.constant 0 : i32
    %c0_i32_0 = arith.constant 0 : i32
    return %arg0, %c0_i32 : i32, i32
  }
}

</mosaic_0001>

<llo_original>
// kernel: multilabel_focal_loss.1
$region0: #{multilabel_focal_loss.1}
  #allocation0 [shape = 'u32[]', space=smem, size = 0x4, offset = 0x4, fixed_abs, tag = 'smem constant byte address 0x4 - core index']
  #allocation1 [shape = 'u32[72,128]{1,0:T(1,128)}', space=vmem, size = 0x9000, scoped, tag = 'internal scratch']
  %s0 = inlined_call_operand.vmem [shape: f32[16,128], index: 0, kind: input, shape index: {}]
  %s1 = inlined_call_operand.vmem [shape: s32[16,16], index: 1, kind: input, shape index: {}]
  %s2 = inlined_call_operand.vmem [shape: f32[16,128], index: 2, kind: output, shape index: {}]
  %s3 = sld [smem:[#allocation0]]
  $region45: #{multilabel_focal_loss.1} parent=0
    _
  %s5 = ssub.s32 1, %s3
  %s6 = scalar_select 0, %s5, %s3
  loop: start=0, step=1, limit=4
  $region2: #{multilabel_focal_loss.1} parent=0 // loop_pre_header
    _
  $region3: #{multilabel_focal_loss.1} parent=0 // loop_header
    %s8 = sphi 0, %s12
    %p9 = scmp.ge.s32.totalorder %s8, 4
    %s15 = sphi 0, %s27
    %s16 = sphi 0, %s23
    %s17 = sphi 0, %s15
    %s18 = sphi 0, %s16
    %s19 = sphi 0, %s17
    %s20 = sphi 0, %s18
    %s32 = sphi 0, %s34
    %s35 = sphi 0, %s32
    %s36 = sphi 0, %s35
    %s52 = sphi 0, %s36
    %s60 = sphi 0, %s62
    %s63 = sphi 0, %s60
    %s64 = sphi 0, %s63
    %s80 = sphi 0, %s64
    %s86 = sphi 0, %s88
    %s89 = sphi 0, %s86
    %s90 = sphi 0, %s89
    %s106 = sphi 0, %s90
  $region4: #{multilabel_focal_loss.1} parent=0 // loop_header_branch
    %11 = sbr.rel (%p9) target = $region8
  $region5: #{multilabel_focal_loss.1} parent=0 // loop_body
    %s13 = ssub.s32 %s8, 1
    %s14 = ssub.s32 %s8, 2
    %s21 = sadd.s32 1, %s16
    %p22 = scmp.ge.s32.totalorder %s21, 1
    %s23 = scalar_select %p22, 0, %s21
    %s24 = sadd.s32 1, %s15
    %s25 = scalar_select %p22, %s24, %s15
    %p26 = scmp.ge.s32.totalorder %s25, 2
    %s27 = scalar_select %p26, 0, %s25
    %s28 = sadd.s32 %s15, %s16
    %s29 = sadd.s32 %s27, %s23
    %s30 = ssub.s32 %s28, %s29
    %p31 = scmp.eq.s32.totalorder %s30, 0
    %s33 = sadd.s32 %s32, 1
    %s34 = scalar_select %p31, %s32, %s33
    %p37 = pneg %p31
    %p38 = scmp.eq.s32.totalorder %s8, 1
    %p39 = por %p37, %p38
    %p40 = scmp.ne.s32.totalorder %s32, %s35
    %p41 = scmp.eq.s32.totalorder %s8, 0
    %p42 = por %p40, %p41
    %p43 = scmp.ne.s32.totalorder %s32, %s35
    %p44 = scmp.eq.s32.totalorder %s13, 1
    %p45 = por %p43, %p44
    %p46 = scmp.ne.s32.totalorder %s35, %s36
    %p47 = scmp.eq.s32.totalorder %s13, 0
    %p48 = por %p46, %p47
    %p49 = scmp.ne.s32.totalorder %s35, %s36
    %p50 = scmp.eq.s32.totalorder %s14, 1
    %p51 = por %p49, %p50
    %p53 = scmp.ne.s32.totalorder %s36, %s52
    %p54 = scmp.eq.s32.totalorder %s14, 0
    %p55 = por %p53, %p54
    %s56 = sadd.s32 %s15, %s16
    %s57 = sadd.s32 %s27, %s23
    %s58 = ssub.s32 %s56, %s57
    %p59 = scmp.eq.s32.totalorder %s58, 0
    %s61 = sadd.s32 %s60, 1
    %s62 = scalar_select %p59, %s60, %s61
    %p65 = pneg %p59
    %p66 = scmp.eq.s32.totalorder %s8, 1
    %p67 = por %p65, %p66
    %p68 = scmp.ne.s32.totalorder %s60, %s63
    %p69 = scmp.eq.s32.totalorder %s8, 0
    %p70 = por %p68, %p69
    %p71 = scmp.ne.s32.totalorder %s60, %s63
    %p72 = scmp.eq.s32.totalorder %s13, 1
    %p73 = por %p71, %p72
    %p74 = scmp.ne.s32.totalorder %s63, %s64
    %p75 = scmp.eq.s32.totalorder %s13, 0
    %p76 = por %p74, %p75
    %p77 = scmp.ne.s32.totalorder %s63, %s64
    %p78 = scmp.eq.s32.totalorder %s14, 1
    %p79 = por %p77, %p78
    %p81 = scmp.ne.s32.totalorder %s64, %s80
    %p82 = scmp.eq.s32.totalorder %s14, 0
    %p83 = por %p81, %p82
    %s84 = ssub.s32 %s15, %s27
    %p85 = scmp.eq.s32.totalorder %s84, 0
    %s87 = sadd.s32 %s86, 1
    %s88 = scalar_select %p85, %s86, %s87
    %p91 = pneg %p85
    %p92 = scmp.eq.s32.totalorder %s8, 1
    %p93 = por %p91, %p92
    %p94 = scmp.ne.s32.totalorder %s86, %s89
    %p95 = scmp.eq.s32.totalorder %s8, 0
    %p96 = por %p94, %p95
    %p97 = scmp.ne.s32.totalorder %s86, %s89
    %p98 = scmp.eq.s32.totalorder %s13, 1
    %p99 = por %p97, %p98
    %p100 = scmp.ne.s32.totalorder %s89, %s90
    %p101 = scmp.eq.s32.totalorder %s13, 0
    %p102 = por %p100, %p101
    %p103 = scmp.ne.s32.totalorder %s89, %s90
    %p104 = scmp.eq.s32.totalorder %s14, 1
    %p105 = por %p103, %p104
    %p107 = scmp.ne.s32.totalorder %s90, %s106
    %p108 = scmp.eq.s32.totalorder %s14, 0
    %p109 = por %p107, %p108
    %p110 = scmp.le.s32.totalorder 1, %s8
    %p111 = scmp.lt.s32.totalorder %s8, 3
    %p112 = pnand %p110, %p111
    %p113 = pneg %p112
    // Predicated region
    $region9: #{multilabel_focal_loss.1} parent=5 // pred_check
      _
    $region10: #{multilabel_focal_loss.1} parent=5 // pred_check_branch
      %115 = sbr.rel (%p112) target = $region12
    $region11: #{multilabel_focal_loss.1} parent=5 // pred_region
      %s116 = ssub.s32 %s8, 1
    $region12: #{multilabel_focal_loss.1} parent=5 // pred_fallthru
      _
    %p117 = scmp.lt.s32.totalorder %s8, 2
    // Predicated region
    $region13: #{multilabel_focal_loss.1} parent=5 // pred_check
      %p118 = pneg %p117
    $region14: #{multilabel_focal_loss.1} parent=5 // pred_check_branch
      %120 = sbr.rel (%p118) target = $region16
    $region15: #{multilabel_focal_loss.1} parent=5 // pred_region
      // Predicated region
      $region17: #{multilabel_focal_loss.1} parent=15 // pred_check
        %p121 = pneg %p42
      $region18: #{multilabel_focal_loss.1} parent=15 // pred_check_branch
        %123 = sbr.rel (%p121) target = $region20
      $region19: #{multilabel_focal_loss.1} parent=15 // pred_region
        %s124 = sadd.s32 %s15, %s16
        %p125 = scmp.lt.s32.totalorder %s124, 1
        %s126 = scalar_select %p125, %s124, 1
        %s127 = smul.addr %s126, 8
        %s128 = scalar_lea.vmem %s0, %s127
        %s129 = sadd.s32 %s15, %s16
      $region20: #{multilabel_focal_loss.1} parent=15 // pred_fallthru
        _
      // Predicated region
      $region21: #{multilabel_focal_loss.1} parent=15 // pred_check
        %p130 = pneg %p70
      $region22: #{multilabel_focal_loss.1} parent=15 // pred_check_branch
        %132 = sbr.rel (%p130) target = $region24
      $region23: #{multilabel_focal_loss.1} parent=15 // pred_region
        %s133 = sadd.s32 %s15, %s16
        %p134 = scmp.lt.s32.totalorder %s133, 1
        %s135 = scalar_select %p134, %s133, 1
        %s136 = smul.addr %s135, 8
        %s137 = scalar_lea.vmem %s1, %s136
        %s138 = sadd.s32 %s15, %s16
      $region24: #{multilabel_focal_loss.1} parent=15 // pred_fallthru
        _
    $region16: #{multilabel_focal_loss.1} parent=5 // pred_fallthru
      _
    %p139 = scmp.le.s32.totalorder 1, %s8
    %p140 = scmp.lt.s32.totalorder %s8, 3
    %p141 = pnand %p139, %p140
    %p142 = pneg %p141
    // Predicated region
    $region25: #{multilabel_focal_loss.1} parent=5 // pred_check
      _
    $region26: #{multilabel_focal_loss.1} parent=5 // pred_check_branch
      %144 = sbr.rel (%p141) target = $region28
    $region27: #{multilabel_focal_loss.1} parent=5 // pred_region
      %s145 = ssub.s32 %s8, 1
      %s146 = sadd.s32 %s17, %s18
      %p147 = scmp.lt.s32.totalorder %s146, 1
      %s148 = scalar_select %p147, %s146, 1
      %s149 = smul.addr %s148, 8
      %s150 = scalar_lea.vmem %s0, %s149
      %p151 = pneg %p48
      %p152 = pneg %p45
      %s153 = sadd.s32 %s17, %s18
      %p154 = scmp.lt.s32.totalorder %s153, 1
      %s155 = scalar_select %p154, %s153, 1
      %s156 = smul.addr %s155, 8
      %s157 = scalar_lea.vmem %s1, %s156
      %p158 = pneg %p76
      %p159 = pneg %p73
      %p160 = pneg %p102
      %p161 = pneg %p99
      %p162 = scmp.lt.s32.totalorder %s17, 1
      %s163 = scalar_select %p162, %s17, 1
      %s164 = smul.addr %s163, 8
      %s165 = scalar_lea.vmem %s2, %s164
      %s166 = sadd.s32 %s17, %s18
      %p167 = scmp.lt.s32.totalorder %s166, 1
      %s168 = scalar_select %p167, %s166, 1
      %s169 = smul.addr %s168, 8
      %s170 = scalar_lea.vmem %s0, %s169
      %s171 = sadd.s32 %s17, %s18
      %s172 = sadd.s32 %s17, %s18
      %p173 = scmp.lt.s32.totalorder %s172, 1
      %s174 = scalar_select %p173, %s172, 1
      %s175 = smul.addr %s174, 8
      %s176 = scalar_lea.vmem %s1, %s175
      %s177 = sadd.s32 %s17, %s18
      %p178 = scmp.lt.s32.totalorder %s17, 1
      %s179 = scalar_select %p178, %s17, 1
      %s180 = smul.addr %s179, 8
      %s181 = scalar_lea.vmem %s2, %s180
      %p182 = scmp.eq.s32.totalorder %s18, 0
      // Predicated region
      $region29: #{multilabel_focal_loss.1} parent=27 // pred_check
        %p183 = pneg %p182
      $region30: #{multilabel_focal_loss.1} parent=27 // pred_check_branch
        %185 = sbr.rel (%p183) target = $region32
      $region31: #{multilabel_focal_loss.1} parent=27 // pred_region
        %186 = vst [vmem:[%s181] sm:$0xff] 0.0
      $region32: #{multilabel_focal_loss.1} parent=27 // pred_fallthru
        _
      %v187 = vld [vmem:[%s170] sm:$0xff]
      %v188 = vlaneseq
      %v189 = vand.u32 %v188, 127
      %v190 = vlaneseq
      %v191 = vshrl.u32 %v190, 7
      %v192 = vadd.s32 %v191, 8
      %v193 = vshra.s32 %v189, 3
      %vm194 = vcmp.eq.s32.totalorder %v193, %v191
      %vm195 = vcmp.eq.s32.totalorder %v193, %v192
      %v196 = vsel %vm194, 1, 0
      %v197 = vsel %vm195, 1, 0
      %v198 = vcvt.s32.f32 %v196
      %v199 = vcvt.s32.f32 %v197
      %v200 = vld [vmem:[%s176] sm:$0xff]
      %v201 = vcvt.s32.f32 %v200
      %vm202 = vcmask 130048
      %v204 = vsel %vm202, %v201, 0
      %206 = vmatpush.msra.mxu0 0.0
      %207 = vmatpush.msra.mxu0 0.0
      %208 = vmatpush.msra.mxu0 0.0
      %209 = vmatpush.msra.mxu0 0.0
      %210 = vmatpush.msra.mxu0 0.0
      %211 = vmatpush.msra.mxu0 0.0
      %212 = vmatpush.msra.mxu0 0.0
      %213 = vmatpush.msra.mxu0 0.0
      %214 = vmatpush.msra.mxu0 0.0
      %215 = vmatpush.msra.mxu0 0.0
      %216 = vmatpush.msra.mxu0 0.0
      %217 = vmatpush.msra.mxu0 0.0
      %218 = vmatpush.msra.mxu0 0.0
      %219 = vmatpush.msra.mxu0 0.0
      %220 = vmatpush.msra.mxu0 %v199
      %221 = vmatpush.msra.mxu0 %v198
      %222 = vmatmul.f32.gmra.mxu0 %v204
      %v223 = vpop.f32.mrf.mxu0
      %v224 = vadd.f32 0.0, %v223
      %225 = vdwg.mxu0
      %v226 = vand.u32 %v189, 7
      %v227 = vcvt.s32.f32 %v226
      %vm228 = vcmp.eq.f32.partialorder %v224, %v227
      %v229 = vand.u32 2147483647, %v187
      %v230 = vsub.f32 0.0, %v229
      %v231 = vmul.f32 %v230, 1.442695
      %v232 = vpow.pop %v231
      %v233 = vadd.f32 %v232, 1.0
      %v234 = vrcp.pop %v233
      %v235 = vsub.f32 0.0, %v187
      %v236 = vsel %vm228, %v235, %v187
      %vm237 = vcmp.ge.f32.partialorder %v236, 0.0
      %v238 = vmul.f32 %v232, %v234
      %v239 = vsel %vm237, %v234, %v238
      %v240 = vmax.f32 %v236, 0.0
      %v241 = vlog2.pop %v233
      %v242 = vmul.f32 %v241, 0.6931472
      %v243 = vadd.f32 %v240, %v242
      %v244 = vsel %vm228, 0.25, 0.75
      %v245 = vmul.f32 %v239, %v239
      %v246 = vmul.f32 %v244, %v245
      %v247 = vmul.f32 %v246, %v243
      %v248 = vld [vmem:[%s181] sm:$0xff]
      %v249 = vadd.f32 %v248, %v247
      %250 = vst [vmem:[%s181] sm:$0xff] %v249
      %p251 = scmp.lt.s32.totalorder %s17, 1
      %s252 = scalar_select %p251, %s17, 1
      %s253 = smul.addr %s252, 8
      %s254 = scalar_lea.vmem %s2, %s253
      // Predicated region
      $region33: #{multilabel_focal_loss.1} parent=27 // pred_check
        %p255 = pneg %p99
      $region34: #{multilabel_focal_loss.1} parent=27 // pred_check_branch
        %257 = sbr.rel (%p255) target = $region36
      $region35: #{multilabel_focal_loss.1} parent=27 // pred_region
        _
      $region36: #{multilabel_focal_loss.1} parent=27 // pred_fallthru
        _
    $region28: #{multilabel_focal_loss.1} parent=5 // pred_fallthru
      _
    %p258 = scmp.le.s32.totalorder 2, %s8
    // Predicated region
    $region37: #{multilabel_focal_loss.1} parent=5 // pred_check
      %p259 = pneg %p258
    $region38: #{multilabel_focal_loss.1} parent=5 // pred_check_branch
      %261 = sbr.rel (%p259) target = $region40
    $region39: #{multilabel_focal_loss.1} parent=5 // pred_region
      %s262 = ssub.s32 %s8, 2
      // Predicated region
      $region41: #{multilabel_focal_loss.1} parent=39 // pred_check
        %p263 = pneg %p105
      $region42: #{multilabel_focal_loss.1} parent=39 // pred_check_branch
        %265 = sbr.rel (%p263) target = $region44
      $region43: #{multilabel_focal_loss.1} parent=39 // pred_region
        %p266 = scmp.lt.s32.totalorder %s19, 1
        %s267 = scalar_select %p266, %s19, 1
        %s268 = smul.addr %s267, 8
        %s269 = scalar_lea.vmem %s2, %s268
      $region44: #{multilabel_focal_loss.1} parent=39 // pred_fallthru
        _
    $region40: #{multilabel_focal_loss.1} parent=5 // pred_fallthru
      _
  $region6: #{multilabel_focal_loss.1} parent=0 // loop_footer
    %s12 = sadd.s32 1, %s8
  $region7: #{multilabel_focal_loss.1} parent=0 // loop_footer_branch
    %7 = sbr.rel target = $region3
  $region8: #{multilabel_focal_loss.1} parent=0 // loop_exit
    _

</llo_original>
